<compile_context>
chip_gen: v7x
topology: tpu7x:2x2x1
jax: 0.10.0
libtpu: 0.0.40
codegen_flags: <defaults>
</compile_context>

<pallas_src>
import numpy as np
import jax
import jax.numpy as jnp
from jax.experimental import pallas as pl
from jax.experimental.pallas import tpu as pltpu


def _round_up(n, m):
    return (n + m - 1) // m * m


# --------------------------------------------------------------------------
# Fused kernel: Linear1 + ReLU + Linear2 with both weights resident in VMEM.
#   h = relu(x @ W1^T + b1)
#   o = (h @ W2^T) * s12 + b2s       where s12 = 1/(c1*c2), b2s = b2/c2
# --------------------------------------------------------------------------
def _block_wn_kernel(x_ref, w1_ref, b1_ref, w2_ref, b2s_ref, s12_ref, o_ref):
    h = jnp.dot(x_ref[...], w1_ref[...], preferred_element_type=jnp.float32)
    h = jnp.maximum(h + b1_ref[...], 0.0)
    y = jnp.dot(h, w2_ref[...], preferred_element_type=jnp.float32)
    o_ref[...] = y * s12_ref[0, 0] + b2s_ref[...]


def _inv_norm_scale(w):
    """1 / sqrt(max_row_abs_sum(W) * max_col_abs_sum(W)), computed once."""
    a = jnp.abs(w.astype(jnp.float32))
    inf_norm = jnp.max(jnp.sum(a, axis=1))   # max row abs-sum
    one_norm = jnp.max(jnp.sum(a, axis=0))   # max col abs-sum
    return jax.lax.rsqrt(one_norm * inf_norm)   # exact rsqrt (EUP), not approx


def block_wn_forward(x, w1, b1, w2, b2, *, max_block_m=512):
    """Block_WN forward.

    x        : (..., D) float32
    w1, w2   : (D, D)   float32  (PyTorch Linear layout: (out, in))
    b1, b2   : (D,)     float32
    returns  : same shape as x
    """
    orig_shape = x.shape
    D = orig_shape[-1]
    x2 = x.reshape(-1, D).astype(jnp.float32)
    M = x2.shape[0]

    # ---- Row tiling: fold all leading dims into M; lane dim D stays whole.
    Mr = _round_up(M, 8)
    block_m = min(max_block_m, Mr)
    # Guarantee >= 2 row tiles when possible so the "parallel" axis can be
    # sharded across v7x's two TensorCores.
    if Mr // block_m < 2 and Mr > 8:
        block_m = _round_up(pl.cdiv(Mr, 2), 8)
    Mp = _round_up(M, block_m)
    if Mp != M:
        x2 = jnp.pad(x2, ((0, Mp - M), (0, 0)))
    grid = (Mp // block_m,)

    # ---- Hoisted norm scales (done once, outside the grid loop).
    inv1 = _inv_norm_scale(w1)
    inv2 = _inv_norm_scale(w2)
    s12 = (inv1 * inv2).reshape(1, 1).astype(jnp.float32)   # SMEM scalar
    b2s = (b2.astype(jnp.float32) * inv2).reshape(1, D)     # bias rescaled once

    # Layout glue: transpose weights once so the kernel does lane-dense
    # (M, D) @ (D, D) matmuls.
    w1t = jnp.transpose(w1).astype(jnp.float32)
    w2t = jnp.transpose(w2).astype(jnp.float32)
    b1r = b1.reshape(1, D).astype(jnp.float32)

    # ---- Explicit VMEM budget (worst case: everything double-buffered).
    io_bytes = 2 * 2 * block_m * D * 4          # x + out tiles, 2 buffers each
    weight_bytes = 2 * 2 * D * D * 4            # W1^T + W2^T, 2 buffers each
    bias_bytes = 2 * 2 * D * 4
    needed = io_bytes + weight_bytes + bias_bytes
    vmem_limit = max(32 << 20, min(int(needed * 2) + (4 << 20), 64 << 20))

    out_shape = jax.ShapeDtypeStruct((Mp, D), jnp.float32)
    compiler_params = pltpu.CompilerParams(
        dimension_semantics=("parallel",),      # shard row tiles across cores
        vmem_limit_bytes=vmem_limit,
    )

    def _resident_spec(shape, single_buffer):
        # Constant block index -> weight/bias stays resident in VMEM; with
        # Buffered(1) it is also single-buffered (no pipelining is lost).
        if single_buffer:
            return pl.BlockSpec(shape, lambda i: (0,) * len(shape),
                                pipeline_mode=pl.Buffered(1))
        return pl.BlockSpec(shape, lambda i: (0,) * len(shape))

    def _launch(single_buffer):
        return pl.pallas_call(
            _block_wn_kernel,
            out_shape=out_shape,
            grid=grid,
            in_specs=[
                pl.BlockSpec((block_m, D), lambda i: (i, 0)),       # x rows
                _resident_spec((D, D), single_buffer),              # W1^T
                _resident_spec((1, D), single_buffer),              # b1
                _resident_spec((D, D), single_buffer),              # W2^T
                _resident_spec((1, D), single_buffer),              # b2 / c2
                pl.BlockSpec(memory_space=pltpu.MemorySpace.SMEM),  # 1/(c1*c2)
            ],
            out_specs=pl.BlockSpec((block_m, D), lambda i: (i, 0)),
            compiler_params=compiler_params,
        )(x2, w1t, b1r, w2t, b2s, s12)

    try:
        out = _launch(single_buffer=True)
    except Exception:
        # Fallback for jax builds that reject pipeline_mode=Buffered(1); the
        # double-buffered resident-weight path is otherwise identical.
        out = _launch(single_buffer=False)

    return out[:M].reshape(orig_shape)


# --------------------------------------------------------------------------
# Pure-numpy reference (PyTorch semantics) for a correctness check.
# --------------------------------------------------------------------------
def block_wn_reference(x, w1, b1, w2, b2):
    f64 = lambda a: np.asarray(a, np.float64)
    x, w1, b1, w2, b2 = map(f64, (x, w1, b1, w2, b2))

    def scale(w):
        inf_norm = np.max(np.sum(np.abs(w), axis=1))   # max row abs-sum
        one_norm = np.max(np.sum(np.abs(w), axis=0))   # max col abs-sum
        return np.sqrt(one_norm * inf_norm)

    c1, c2 = scale(w1), scale(w2)
    h = np.maximum((x @ w1.T + b1) / c1, 0.0)
    return (h @ w2.T + b2) / c2


# --------------------------------------------------------------------------
if __name__ == "__main__":
    key = jax.random.PRNGKey(0)
    k_x, k_w1, k_b1, k_w2, k_b2 = jax.random.split(key, 5)

    B, D = 16, 128                     # block_dim=128 keeps everything lane-dense
    bound = 1.0 / np.sqrt(D)           # PyTorch nn.Linear default init range

    x = jax.random.normal(k_x, (B, D), dtype=jnp.float32)
    w1 = jax.random.uniform(k_w1, (D, D), minval=-bound, maxval=bound, dtype=jnp.float32)
    b1 = jax.random.uniform(k_b1, (D,), minval=-bound, maxval=bound, dtype=jnp.float32)
    w2 = jax.random.uniform(k_w2, (D, D), minval=-bound, maxval=bound, dtype=jnp.float32)
    b2 = jax.random.uniform(k_b2, (D,), minval=-bound, maxval=bound, dtype=jnp.float32)

    out = block_wn_forward(x, w1, b1, w2, b2)
    out = jax.block_until_ready(out)

    ref = block_wn_reference(x, w1, b1, w2, b2)
    assert out.shape == ref.shape, (out.shape, ref.shape)
    rel_err = float(np.max(np.abs(np.asarray(out, np.float64) - ref))
                    / (np.max(np.abs(ref)) + 1e-12))
    assert rel_err < 1e-4, f"relative error too large: {rel_err}"

    print("KERNEL_OK")
</pallas_src>

<mosaic_0001>
module attributes {stable_mosaic.version = 11 : i64} {
  func.func @_block_wn_kernel(%arg0: i32, %arg1: memref<8x128xf32, #tpu.memory_space<vmem>>, %arg2: memref<128x128xf32, #tpu.memory_space<vmem>>, %arg3: memref<1x128xf32, #tpu.memory_space<vmem>>, %arg4: memref<128x128xf32, #tpu.memory_space<vmem>>, %arg5: memref<1x128xf32, #tpu.memory_space<vmem>>, %arg6: memref<1x1xf32, #tpu.memory_space<smem>>, %arg7: memref<8x128xf32, #tpu.memory_space<vmem>>) attributes {dimension_semantics = [#tpu.dimension_semantics<parallel>], iteration_bounds = array<i64: 2>, scalar_prefetch = 0 : i64, scratch_operands = 0 : i64, tpu.core_type = #tpu.core_type<tc>, window_params = [{transform_indices = @transform_0, window_bounds = array<i64: 8, 128>}, {pipeline_mode = #tpu.pipeline_mode<synchronous>, transform_indices = @transform_1, window_bounds = array<i64: 128, 128>}, {pipeline_mode = #tpu.pipeline_mode<synchronous>, transform_indices = @transform_2, window_bounds = array<i64: 1, 128>}, {pipeline_mode = #tpu.pipeline_mode<synchronous>, transform_indices = @transform_3, window_bounds = array<i64: 128, 128>}, {pipeline_mode = #tpu.pipeline_mode<synchronous>, transform_indices = @transform_4, window_bounds = array<i64: 1, 128>}, {transform_indices = @transform_5, window_bounds = array<i64: 1, 1>}, {transform_indices = @transform_6, window_bounds = array<i64: 8, 128>}]} {
    %c0 = arith.constant 0 : index
    %c0_0 = arith.constant 0 : index
    %0 = vector.load %arg1[%c0, %c0_0] : memref<8x128xf32, #tpu.memory_space<vmem>>, vector<8x128xf32>
    %c0_1 = arith.constant 0 : index
    %c0_2 = arith.constant 0 : index
    %1 = vector.load %arg2[%c0_1, %c0_2] : memref<128x128xf32, #tpu.memory_space<vmem>>, vector<128x128xf32>
    %cst = arith.constant dense<0.000000e+00> : vector<8x128xf32>
    %2 = tpu.matmul %0, %1, %cst {dimension_numbers = #tpu.dot_dimension_numbers<[1], [0], [0], [1], [0, 0, 1, 1], [], []>} : vector<8x128xf32>, vector<128x128xf32>, vector<8x128xf32> -> vector<8x128xf32>
    %c0_3 = arith.constant 0 : index
    %c0_4 = arith.constant 0 : index
    %3 = vector.load %arg3[%c0_3, %c0_4] : memref<1x128xf32, #tpu.memory_space<vmem>>, vector<1x128xf32>
    %4 = vector.broadcast %3 : vector<1x128xf32> to vector<8x128xf32>
    %5 = arith.addf %2, %4 : vector<8x128xf32>
    %cst_5 = arith.constant 0.000000e+00 : f32
    %6 = vector.broadcast %cst_5 : f32 to vector<8x128xf32>
    %7 = arith.maximumf %5, %6 : vector<8x128xf32>
    %c0_6 = arith.constant 0 : index
    %c0_7 = arith.constant 0 : index
    %8 = vector.load %arg4[%c0_6, %c0_7] : memref<128x128xf32, #tpu.memory_space<vmem>>, vector<128x128xf32>
    %cst_8 = arith.constant dense<0.000000e+00> : vector<8x128xf32>
    %9 = tpu.matmul %7, %8, %cst_8 {dimension_numbers = #tpu.dot_dimension_numbers<[1], [0], [0], [1], [0, 0, 1, 1], [], []>} : vector<8x128xf32>, vector<128x128xf32>, vector<8x128xf32> -> vector<8x128xf32>
    %c0_9 = arith.constant 0 : index
    %c0_10 = arith.constant 0 : index
    %10 = memref.load %arg6[%c0_9, %c0_10] : memref<1x1xf32, #tpu.memory_space<smem>>
    %11 = vector.broadcast %10 : f32 to vector<8x128xf32>
    %12 = arith.mulf %9, %11 : vector<8x128xf32>
    %c0_11 = arith.constant 0 : index
    %c0_12 = arith.constant 0 : index
    %13 = vector.load %arg5[%c0_11, %c0_12] : memref<1x128xf32, #tpu.memory_space<vmem>>, vector<1x128xf32>
    %14 = vector.broadcast %13 : vector<1x128xf32> to vector<8x128xf32>
    %15 = arith.addf %12, %14 : vector<8x128xf32>
    %c0_13 = arith.constant 0 : index
    %c0_14 = arith.constant 0 : index
    %16 = vector.load %arg7[%c0_13, %c0_14] : memref<8x128xf32, #tpu.memory_space<vmem>>, vector<8x128xf32>
    tpu.vector_store %arg7[%c0_13, %c0_14], %15 {strides = array<i32>} : memref<8x128xf32, #tpu.memory_space<vmem>>, vector<8x128xf32>,
    return
  }
  func.func @transform_0(%arg0: i32) -> (i32, i32) {
    %c0_i32 = arith.constant 0 : i32
    %c0_i32_0 = arith.constant 0 : i32
    return %arg0, %c0_i32 : i32, i32
  }
  func.func @transform_1(%arg0: i32) -> (i32, i32) {
    %c0_i32 = arith.constant 0 : i32
    %c0_i32_0 = arith.constant 0 : i32
    %c0_i32_1 = arith.constant 0 : i32
    return %c0_i32, %c0_i32_0 : i32, i32
  }
  func.func @transform_2(%arg0: i32) -> (i32, i32) {
    %c0_i32 = arith.constant 0 : i32
    %c0_i32_0 = arith.constant 0 : i32
    %c0_i32_1 = arith.constant 0 : i32
    return %c0_i32, %c0_i32_0 : i32, i32
  }
  func.func @transform_3(%arg0: i32) -> (i32, i32) {
    %c0_i32 = arith.constant 0 : i32
    %c0_i32_0 = arith.constant 0 : i32
    %c0_i32_1 = arith.constant 0 : i32
    return %c0_i32, %c0_i32_0 : i32, i32
  }
  func.func @transform_4(%arg0: i32) -> (i32, i32) {
    %c0_i32 = arith.constant 0 : i32
    %c0_i32_0 = arith.constant 0 : i32
    %c0_i32_1 = arith.constant 0 : i32
    return %c0_i32, %c0_i32_0 : i32, i32
  }
  func.func @transform_5(%arg0: i32) -> (i32, i32) {
    %c0_i32 = arith.constant 0 : i32
    %c0_i32_0 = arith.constant 0 : i32
    %c0_i32_1 = arith.constant 0 : i32
    return %c0_i32, %c0_i32_0 : i32, i32
  }
  func.func @transform_6(%arg0: i32) -> (i32, i32) {
    %c0_i32 = arith.constant 0 : i32
    %c0_i32_0 = arith.constant 0 : i32
    return %arg0, %c0_i32 : i32, i32
  }
}

module attributes {stable_mosaic.version = 11 : i64} {
  func.func @_block_wn_kernel(%arg0: i32, %arg1: memref<8x128xf32, #tpu.memory_space<vmem>>, %arg2: memref<128x128xf32, #tpu.memory_space<vmem>>, %arg3: memref<1x128xf32, #tpu.memory_space<vmem>>, %arg4: memref<128x128xf32, #tpu.memory_space<vmem>>, %arg5: memref<1x128xf32, #tpu.memory_space<vmem>>, %arg6: memref<1x1xf32, #tpu.memory_space<smem>>, %arg7: memref<8x128xf32, #tpu.memory_space<vmem>>) attributes {dimension_semantics = [#tpu.dimension_semantics<parallel>], iteration_bounds = array<i64: 2>, scalar_prefetch = 0 : i64, scratch_operands = 0 : i64, tpu.core_type = #tpu.core_type<tc>, window_params = [{transform_indices = @transform_0, window_bounds = array<i64: 8, 128>}, {pipeline_mode = #tpu.pipeline_mode<synchronous>, transform_indices = @transform_1, window_bounds = array<i64: 128, 128>}, {pipeline_mode = #tpu.pipeline_mode<synchronous>, transform_indices = @transform_2, window_bounds = array<i64: 1, 128>}, {pipeline_mode = #tpu.pipeline_mode<synchronous>, transform_indices = @transform_3, window_bounds = array<i64: 128, 128>}, {pipeline_mode = #tpu.pipeline_mode<synchronous>, transform_indices = @transform_4, window_bounds = array<i64: 1, 128>}, {transform_indices = @transform_5, window_bounds = array<i64: 1, 1>}, {transform_indices = @transform_6, window_bounds = array<i64: 8, 128>}]} {
    %c0 = arith.constant 0 : index
    %c0_0 = arith.constant 0 : index
    %0 = vector.load %arg1[%c0, %c0_0] : memref<8x128xf32, #tpu.memory_space<vmem>>, vector<8x128xf32>
    %c0_1 = arith.constant 0 : index
    %c0_2 = arith.constant 0 : index
    %1 = vector.load %arg2[%c0_1, %c0_2] : memref<128x128xf32, #tpu.memory_space<vmem>>, vector<128x128xf32>
    %cst = arith.constant dense<0.000000e+00> : vector<8x128xf32>
    %2 = tpu.matmul %0, %1, %cst {dimension_numbers = #tpu.dot_dimension_numbers<[1], [0], [0], [1], [0, 0, 1, 1], [], []>} : vector<8x128xf32>, vector<128x128xf32>, vector<8x128xf32> -> vector<8x128xf32>
    %c0_3 = arith.constant 0 : index
    %c0_4 = arith.constant 0 : index
    %3 = vector.load %arg3[%c0_3, %c0_4] : memref<1x128xf32, #tpu.memory_space<vmem>>, vector<1x128xf32>
    %4 = vector.broadcast %3 : vector<1x128xf32> to vector<8x128xf32>
    %5 = arith.addf %2, %4 : vector<8x128xf32>
    %cst_5 = arith.constant 0.000000e+00 : f32
    %6 = vector.broadcast %cst_5 : f32 to vector<8x128xf32>
    %7 = arith.maximumf %5, %6 : vector<8x128xf32>
    %c0_6 = arith.constant 0 : index
    %c0_7 = arith.constant 0 : index
    %8 = vector.load %arg4[%c0_6, %c0_7] : memref<128x128xf32, #tpu.memory_space<vmem>>, vector<128x128xf32>
    %cst_8 = arith.constant dense<0.000000e+00> : vector<8x128xf32>
    %9 = tpu.matmul %7, %8, %cst_8 {dimension_numbers = #tpu.dot_dimension_numbers<[1], [0], [0], [1], [0, 0, 1, 1], [], []>} : vector<8x128xf32>, vector<128x128xf32>, vector<8x128xf32> -> vector<8x128xf32>
    %c0_9 = arith.constant 0 : index
    %c0_10 = arith.constant 0 : index
    %10 = memref.load %arg6[%c0_9, %c0_10] : memref<1x1xf32, #tpu.memory_space<smem>>
    %11 = vector.broadcast %10 : f32 to vector<8x128xf32>
    %12 = arith.mulf %9, %11 : vector<8x128xf32>
    %c0_11 = arith.constant 0 : index
    %c0_12 = arith.constant 0 : index
    %13 = vector.load %arg5[%c0_11, %c0_12] : memref<1x128xf32, #tpu.memory_space<vmem>>, vector<1x128xf32>
    %14 = vector.broadcast %13 : vector<1x128xf32> to vector<8x128xf32>
    %15 = arith.addf %12, %14 : vector<8x128xf32>
    %c0_13 = arith.constant 0 : index
    %c0_14 = arith.constant 0 : index
    %16 = vector.load %arg7[%c0_13, %c0_14] : memref<8x128xf32, #tpu.memory_space<vmem>>, vector<8x128xf32>
    tpu.vector_store %arg7[%c0_13, %c0_14], %15 {strides = array<i32>} : memref<8x128xf32, #tpu.memory_space<vmem>>, vector<8x128xf32>,
    return
  }
  func.func @transform_0(%arg0: i32) -> (i32, i32) {
    %c0_i32 = arith.constant 0 : i32
    %c0_i32_0 = arith.constant 0 : i32
    return %arg0, %c0_i32 : i32, i32
  }
  func.func @transform_1(%arg0: i32) -> (i32, i32) {
    %c0_i32 = arith.constant 0 : i32
    %c0_i32_0 = arith.constant 0 : i32
    %c0_i32_1 = arith.constant 0 : i32
    return %c0_i32, %c0_i32_0 : i32, i32
  }
  func.func @transform_2(%arg0: i32) -> (i32, i32) {
    %c0_i32 = arith.constant 0 : i32
    %c0_i32_0 = arith.constant 0 : i32
    %c0_i32_1 = arith.constant 0 : i32
    return %c0_i32, %c0_i32_0 : i32, i32
  }
  func.func @transform_3(%arg0: i32) -> (i32, i32) {
    %c0_i32 = arith.constant 0 : i32
    %c0_i32_0 = arith.constant 0 : i32
    %c0_i32_1 = arith.constant 0 : i32
    return %c0_i32, %c0_i32_0 : i32, i32
  }
  func.func @transform_4(%arg0: i32) -> (i32, i32) {
    %c0_i32 = arith.constant 0 : i32
    %c0_i32_0 = arith.constant 0 : i32
    %c0_i32_1 = arith.constant 0 : i32
    return %c0_i32, %c0_i32_0 : i32, i32
  }
  func.func @transform_5(%arg0: i32) -> (i32, i32) {
    %c0_i32 = arith.constant 0 : i32
    %c0_i32_0 = arith.constant 0 : i32
    %c0_i32_1 = arith.constant 0 : i32
    return %c0_i32, %c0_i32_0 : i32, i32
  }
  func.func @transform_6(%arg0: i32) -> (i32, i32) {
    %c0_i32 = arith.constant 0 : i32
    %c0_i32_0 = arith.constant 0 : i32
    return %arg0, %c0_i32 : i32, i32
  }
}

</mosaic_0001>

<llo_original>
// kernel: tpu_custom_call.1
$region0: #{tpu_custom_call.1}
  #allocation0 [shape = 'u32[]', space=smem, size = 0x4, offset = 0x4, fixed_abs, tag = 'smem constant byte address 0x4 - core index']
  #allocation1 [shape = 'u32[144,128]{1,0:T(1,128)}', space=vmem, size = 0x12000, scoped, tag = 'internal scratch']
  #allocation2 [shape = 'f32[1,1]{1,0:T(1,128)S(6)}', space=smem, size = 0x200, scoped, tag = 'scoped memory for tpu_custom_call.1']
  %s0 = inlined_call_operand.hbm [shape: f32[16,128], index: 0, kind: input, shape index: {}]
  %s1 = inlined_call_operand.hbm [shape: f32[128,128], index: 1, kind: input, shape index: {}]
  %s2 = inlined_call_operand.vmem [shape: f32[1,128], index: 2, kind: input, shape index: {}]
  %s3 = inlined_call_operand.hbm [shape: f32[128,128], index: 3, kind: input, shape index: {}]
  %s4 = inlined_call_operand.vmem [shape: f32[1,128], index: 4, kind: input, shape index: {}]
  %s5 = inlined_call_operand.<no memory space> [shape: f32[1,1], index: 5, kind: input, shape index: {}]
  %s6 = inlined_call_operand.hbm [shape: f32[16,128], index: 6, kind: output, shape index: {}]
  %s7 = sld [smem:[#allocation0]]
  $region69: #{tpu_custom_call.1} parent=0
    _
  %s9 = ssub.s32 1, %s7
  %s10 = scalar_select 0, %s9, %s7
  %11 = sst [smem:[#allocation2]] %s5
  $region1: #{tpu_custom_call.1} parent=0
    #allocation3 [shape = 'u8[8192]{0}', space=vmem, size = 0x2000, scoped, tag = 'input window, operand 0']
    #allocation4 [shape = 's32[2]{0}', space=sflag, size = 0x8, scoped, tag = 'scoped memory for tpu_custom_call.1']
    #allocation5 [shape = 's32[2]{0}', space=sflag, size = 0x8, scoped, tag = 'scoped memory for tpu_custom_call.1']
    #allocation6 [shape = 'u8[65536]{0}', space=vmem, size = 0x10000, scoped, tag = 'input window, operand 1, single buffered']
    #allocation7 [shape = 's32[1]{0}', space=sflag, size = 0x4, scoped, tag = 'scoped memory for tpu_custom_call.1']
    #allocation8 [shape = 'u8[65536]{0}', space=vmem, size = 0x10000, scoped, tag = 'input window, operand 3, single buffered']
    #allocation9 [shape = 'u8[8192]{0}', space=vmem, size = 0x2000, scoped, tag = 'output window, operand 0']
    %12 = vsyncpa [#allocation4], 0
    %s13 = scalar_lea.sflag [#allocation4], 1
    %14 = vsyncpa %s13, 0
    %15 = vsyncpa [#allocation7], 0
    %16 = vsyncpa [#allocation5], 0
    %s17 = scalar_lea.sflag [#allocation5], 1
    %18 = vsyncpa %s17, 0
    loop: start=0, step=1, limit=4
    $region2: #{tpu_custom_call.1} parent=1 // loop_pre_header
      _
    $region3: #{tpu_custom_call.1} parent=1 // loop_header
      %s20 = sphi 0, %s24
      %p21 = scmp.ge.s32.totalorder %s20, 4
      %s30 = sphi 0, %s32
      %s33 = sphi 0, %s30
      %s34 = sphi 0, %s33
      %s50 = sphi 0, %s34
      %s54 = sphi 0, %s54
      %s56 = sphi 0, %s54
      %s57 = sphi 0, %s56
      %s71 = sphi 0, %s57
      %s75 = sphi 0, %s75
      %s77 = sphi 0, %s75
      %s78 = sphi 0, %s77
      %s92 = sphi 0, %s78
      %s96 = sphi 0, %s96
      %s98 = sphi 0, %s96
      %s99 = sphi 0, %s98
      %s113 = sphi 0, %s99
      %s117 = sphi 0, %s117
      %s119 = sphi 0, %s117
      %s120 = sphi 0, %s119
      %s134 = sphi 0, %s120
      %s138 = sphi 0, %s138
      %s140 = sphi 0, %s138
      %s141 = sphi 0, %s140
      %s155 = sphi 0, %s141
      %s161 = sphi 0, %s163
      %s164 = sphi 0, %s161
      %s165 = sphi 0, %s164
      %s181 = sphi 0, %s165
    $region4: #{tpu_custom_call.1} parent=1 // loop_header_branch
      %23 = sbr.rel (%p21) target = $region8
    $region5: #{tpu_custom_call.1} parent=1 // loop_body
      %s25 = ssub.s32 %s20, 1
      %s26 = ssub.s32 %s20, 2
      %s27 = sadd.s32 %s20, 1
      %s28 = ssub.s32 %s20, %s27
      %p29 = scmp.eq.s32.totalorder %s28, 0
      %s31 = sadd.s32 %s30, 1
      %s32 = scalar_select %p29, %s30, %s31
      %p35 = pneg %p29
      %p36 = scmp.eq.s32.totalorder %s20, 1
      %p37 = por %p35, %p36
      %p38 = scmp.ne.s32.totalorder %s30, %s33
      %p39 = scmp.eq.s32.totalorder %s20, 0
      %p40 = por %p38, %p39
      %p41 = scmp.ne.s32.totalorder %s30, %s33
      %p42 = scmp.eq.s32.totalorder %s25, 1
      %p43 = por %p41, %p42
      %p44 = scmp.ne.s32.totalorder %s33, %s34
      %p45 = scmp.eq.s32.totalorder %s25, 0
      %p46 = por %p44, %p45
      %p47 = scmp.ne.s32.totalorder %s33, %s34
      %p48 = scmp.eq.s32.totalorder %s26, 1
      %p49 = por %p47, %p48
      %p51 = scmp.ne.s32.totalorder %s34, %s50
      %p52 = scmp.eq.s32.totalorder %s26, 0
      %p53 = por %p51, %p52
      %s55 = sadd.s32 %s54, 1
      %p58 = scmp.eq.s32.totalorder %s20, 1
      %p59 = scmp.ne.s32.totalorder %s54, %s56
      %p60 = scmp.eq.s32.totalorder %s20, 0
      %p61 = por %p59, %p60
      %p62 = scmp.ne.s32.totalorder %s54, %s56
      %p63 = scmp.eq.s32.totalorder %s25, 1
      %p64 = por %p62, %p63
      %p65 = scmp.ne.s32.totalorder %s56, %s57
      %p66 = scmp.eq.s32.totalorder %s25, 0
      %p67 = por %p65, %p66
      %p68 = scmp.ne.s32.totalorder %s56, %s57
      %p69 = scmp.eq.s32.totalorder %s26, 1
      %p70 = por %p68, %p69
      %p72 = scmp.ne.s32.totalorder %s57, %s71
      %p73 = scmp.eq.s32.totalorder %s26, 0
      %p74 = por %p72, %p73
      %s76 = sadd.s32 %s75, 1
      %p79 = scmp.eq.s32.totalorder %s20, 1
      %p80 = scmp.ne.s32.totalorder %s75, %s77
      %p81 = scmp.eq.s32.totalorder %s20, 0
      %p82 = por %p80, %p81
      %p83 = scmp.ne.s32.totalorder %s75, %s77
      %p84 = scmp.eq.s32.totalorder %s25, 1
      %p85 = por %p83, %p84
      %p86 = scmp.ne.s32.totalorder %s77, %s78
      %p87 = scmp.eq.s32.totalorder %s25, 0
      %p88 = por %p86, %p87
      %p89 = scmp.ne.s32.totalorder %s77, %s78
      %p90 = scmp.eq.s32.totalorder %s26, 1
      %p91 = por %p89, %p90
      %p93 = scmp.ne.s32.totalorder %s78, %s92
      %p94 = scmp.eq.s32.totalorder %s26, 0
      %p95 = por %p93, %p94
      %s97 = sadd.s32 %s96, 1
      %p100 = scmp.eq.s32.totalorder %s20, 1
      %p101 = scmp.ne.s32.totalorder %s96, %s98
      %p102 = scmp.eq.s32.totalorder %s20, 0
      %p103 = por %p101, %p102
      %p104 = scmp.ne.s32.totalorder %s96, %s98
      %p105 = scmp.eq.s32.totalorder %s25, 1
      %p106 = por %p104, %p105
      %p107 = scmp.ne.s32.totalorder %s98, %s99
      %p108 = scmp.eq.s32.totalorder %s25, 0
      %p109 = por %p107, %p108
      %p110 = scmp.ne.s32.totalorder %s98, %s99
      %p111 = scmp.eq.s32.totalorder %s26, 1
      %p112 = por %p110, %p111
      %p114 = scmp.ne.s32.totalorder %s99, %s113
      %p115 = scmp.eq.s32.totalorder %s26, 0
      %p116 = por %p114, %p115
      %s118 = sadd.s32 %s117, 1
      %p121 = scmp.eq.s32.totalorder %s20, 1
      %p122 = scmp.ne.s32.totalorder %s117, %s119
      %p123 = scmp.eq.s32.totalorder %s20, 0
      %p124 = por %p122, %p123
      %p125 = scmp.ne.s32.totalorder %s117, %s119
      %p126 = scmp.eq.s32.totalorder %s25, 1
      %p127 = por %p125, %p126
      %p128 = scmp.ne.s32.totalorder %s119, %s120
      %p129 = scmp.eq.s32.totalorder %s25, 0
      %p130 = por %p128, %p129
      %p131 = scmp.ne.s32.totalorder %s119, %s120
      %p132 = scmp.eq.s32.totalorder %s26, 1
      %p133 = por %p131, %p132
      %p135 = scmp.ne.s32.totalorder %s120, %s134
      %p136 = scmp.eq.s32.totalorder %s26, 0
      %p137 = por %p135, %p136
      %s139 = sadd.s32 %s138, 1
      %p142 = scmp.eq.s32.totalorder %s20, 1
      %p143 = scmp.ne.s32.totalorder %s138, %s140
      %p144 = scmp.eq.s32.totalorder %s20, 0
      %p145 = por %p143, %p144
      %p146 = scmp.ne.s32.totalorder %s138, %s140
      %p147 = scmp.eq.s32.totalorder %s25, 1
      %p148 = por %p146, %p147
      %p149 = scmp.ne.s32.totalorder %s140, %s141
      %p150 = scmp.eq.s32.totalorder %s25, 0
      %p151 = por %p149, %p150
      %p152 = scmp.ne.s32.totalorder %s140, %s141
      %p153 = scmp.eq.s32.totalorder %s26, 1
      %p154 = por %p152, %p153
      %p156 = scmp.ne.s32.totalorder %s141, %s155
      %p157 = scmp.eq.s32.totalorder %s26, 0
      %p158 = por %p156, %p157
      %s159 = ssub.s32 %s20, %s27
      %p160 = scmp.eq.s32.totalorder %s159, 0
      %s162 = sadd.s32 %s161, 1
      %s163 = scalar_select %p160, %s161, %s162
      %p166 = pneg %p160
      %p167 = scmp.eq.s32.totalorder %s20, 1
      %p168 = por %p166, %p167
      %p169 = scmp.ne.s32.totalorder %s161, %s164
      %p170 = scmp.eq.s32.totalorder %s20, 0
      %p171 = por %p169, %p170
      %p172 = scmp.ne.s32.totalorder %s161, %s164
      %p173 = scmp.eq.s32.totalorder %s25, 1
      %p174 = por %p172, %p173
      %p175 = scmp.ne.s32.totalorder %s164, %s165
      %p176 = scmp.eq.s32.totalorder %s25, 0
      %p177 = por %p175, %p176
      %p178 = scmp.ne.s32.totalorder %s164, %s165
      %p179 = scmp.eq.s32.totalorder %s26, 1
      %p180 = por %p178, %p179
      %p182 = scmp.ne.s32.totalorder %s165, %s181
      %p183 = scmp.eq.s32.totalorder %s26, 0
      %p184 = por %p182, %p183
      %p185 = scmp.le.s32.totalorder 1, %s20
      %p186 = scmp.lt.s32.totalorder %s20, 3
      %p187 = pnand %p185, %p186
      %p188 = pneg %p187
      // Predicated region
      $region9: #{tpu_custom_call.1} parent=5 // pred_check
        _
      $region10: #{tpu_custom_call.1} parent=5 // pred_check_branch
        %190 = sbr.rel (%p187) target = $region12
      $region11: #{tpu_custom_call.1} parent=5 // pred_region
        %s191 = ssub.s32 %s20, 1
        // Predicated region
        $region13: #{tpu_custom_call.1} parent=11 // pred_check
          %p192 = pneg %p67
        $region14: #{tpu_custom_call.1} parent=11 // pred_check_branch
          %194 = sbr.rel (%p192) target = $region16
        $region15: #{tpu_custom_call.1} parent=11 // pred_region
          %s196 = ssub.s32 2048, 2048
          %197 = vsyncadd [#allocation7], %s196
          %s198 = sshll.u32 [#allocation6], 4
          %s199 = int_to_ptr.vmem [resolvable:$true] %s198
          %204 = dma.hbm_to_vmem [thread:$0]  %s1, 2048, %s199, [#allocation7], 128, 128, 8
        $region16: #{tpu_custom_call.1} parent=11 // pred_fallthru
          _
        // Predicated region
        $region17: #{tpu_custom_call.1} parent=11 // pred_check
          %p205 = pneg %p88
        $region18: #{tpu_custom_call.1} parent=11 // pred_check_branch
          %207 = sbr.rel (%p205) target = $region20
        $region19: #{tpu_custom_call.1} parent=11 // pred_region
          _
        $region20: #{tpu_custom_call.1} parent=11 // pred_fallthru
          _
        // Predicated region
        $region21: #{tpu_custom_call.1} parent=11 // pred_check
          %p208 = pneg %p109
        $region22: #{tpu_custom_call.1} parent=11 // pred_check_branch
          %210 = sbr.rel (%p208) target = $region24
        $region23: #{tpu_custom_call.1} parent=11 // pred_region
          %s212 = ssub.s32 2048, 2048
          %213 = vsyncadd [#allocation7], %s212
          %s214 = sshll.u32 [#allocation8], 4
          %s215 = int_to_ptr.vmem [resolvable:$true] %s214
          %220 = dma.hbm_to_vmem [thread:$0]  %s3, 2048, %s215, [#allocation7], 128, 128, 8
        $region24: #{tpu_custom_call.1} parent=11 // pred_fallthru
          _
        // Predicated region
        $region25: #{tpu_custom_call.1} parent=11 // pred_check
          %p221 = pneg %p130
        $region26: #{tpu_custom_call.1} parent=11 // pred_check_branch
          %223 = sbr.rel (%p221) target = $region28
        $region27: #{tpu_custom_call.1} parent=11 // pred_region
          _
        $region28: #{tpu_custom_call.1} parent=11 // pred_fallthru
          _
        // Predicated region
        $region29: #{tpu_custom_call.1} parent=11 // pred_check
          %p224 = pneg %p151
        $region30: #{tpu_custom_call.1} parent=11 // pred_check_branch
          %226 = sbr.rel (%p224) target = $region32
        $region31: #{tpu_custom_call.1} parent=11 // pred_region
          _
        $region32: #{tpu_custom_call.1} parent=11 // pred_fallthru
          _
      $region12: #{tpu_custom_call.1} parent=5 // pred_fallthru
        _
      %p227 = scmp.lt.s32.totalorder %s20, 2
      // Predicated region
      $region33: #{tpu_custom_call.1} parent=5 // pred_check
        %p228 = pneg %p227
      $region34: #{tpu_custom_call.1} parent=5 // pred_check_branch
        %230 = sbr.rel (%p228) target = $region36
      $region35: #{tpu_custom_call.1} parent=5 // pred_region
        // Predicated region
        $region37: #{tpu_custom_call.1} parent=35 // pred_check
          %p231 = pneg %p40
        $region38: #{tpu_custom_call.1} parent=35 // pred_check_branch
          %233 = sbr.rel (%p231) target = $region40
        $region39: #{tpu_custom_call.1} parent=35 // pred_region
          %s234 = sand.u32 %s30, 1
          %s235 = scalar_lea.sflag [#allocation4], %s234
          %s236 = sand.u32 %s30, 1
          %s237 = smul.addr %s236, 8
          %s238 = scalar_lea.vmem [#allocation3], %s237
          %s240 = ssub.s32 128, 128
          %241 = vsyncadd %s235, %s240
          %s242 = smul.addr %s20, 128
          %s243 = scalar_lea.hbm %s0, %s242
          %s245 = sshll.u32 %s238, 4
          %s246 = int_to_ptr.vmem [resolvable:$true] %s245
          %248 = dma.hbm_to_vmem [thread:$0]  %s243, 128, %s246, %s235
        $region40: #{tpu_custom_call.1} parent=35 // pred_fallthru
          _
      $region36: #{tpu_custom_call.1} parent=5 // pred_fallthru
        _
      %p249 = scmp.le.s32.totalorder 1, %s20
      %p250 = scmp.lt.s32.totalorder %s20, 3
      %p251 = pnand %p249, %p250
      %p252 = pneg %p251
      // Predicated region
      $region41: #{tpu_custom_call.1} parent=5 // pred_check
        _
      $region42: #{tpu_custom_call.1} parent=5 // pred_check_branch
        %254 = sbr.rel (%p251) target = $region44
      $region43: #{tpu_custom_call.1} parent=5 // pred_region
        %s255 = ssub.s32 %s20, 1
        %s256 = sand.u32 %s33, 1
        %s257 = scalar_lea.sflag [#allocation4], %s256
        %s258 = sand.u32 %s33, 1
        %s259 = smul.addr %s258, 8
        %s260 = scalar_lea.vmem [#allocation3], %s259
        // Predicated region
        $region45: #{tpu_custom_call.1} parent=43 // pred_check
          %p261 = pneg %p46
        $region46: #{tpu_custom_call.1} parent=43 // pred_check_branch
          %263 = sbr.rel (%p261) target = $region48
        $region47: #{tpu_custom_call.1} parent=43 // pred_region
          %264 = dma.done %s257, 128
        $region48: #{tpu_custom_call.1} parent=43 // pred_fallthru
          _
        // Predicated region
        $region49: #{tpu_custom_call.1} parent=43 // pred_check
          %p265 = pneg %p67
        $region50: #{tpu_custom_call.1} parent=43 // pred_check_branch
          %267 = sbr.rel (%p265) target = $region52
        $region51: #{tpu_custom_call.1} parent=43 // pred_region
          %268 = dma.done [#allocation7], 2048
        $region52: #{tpu_custom_call.1} parent=43 // pred_fallthru
          _
        // Predicated region
        $region53: #{tpu_custom_call.1} parent=43 // pred_check
          %p269 = pneg %p109
        $region54: #{tpu_custom_call.1} parent=43 // pred_check_branch
          %271 = sbr.rel (%p269) target = $region56
        $region55: #{tpu_custom_call.1} parent=43 // pred_region
          %272 = dma.done [#allocation7], 2048
        $region56: #{tpu_custom_call.1} parent=43 // pred_fallthru
          _
        %s273 = sand.u32 %s33, 1
        %s274 = scalar_lea.sflag [#allocation4], %s273
        %s275 = sand.u32 %s33, 1
        %s276 = smul.addr %s275, 8
        %s277 = scalar_lea.vmem [#allocation3], %s276
        %p278 = pneg %p46
        %p279 = pneg %p43
        %p280 = pneg %p67
        %p281 = pneg %p64
        %p282 = pneg %p88
        %p283 = pneg %p85
        %p284 = pneg %p109
        %p285 = pneg %p106
        %p286 = pneg %p130
        %p287 = pneg %p127
        %p288 = pneg %p151
        %p289 = pneg %p148
        %p290 = pneg %p177
        %p291 = pneg %p174
        %s292 = sand.u32 %s164, 1
        %s293 = scalar_lea.sflag [#allocation5], %s292
        %s294 = sand.u32 %s164, 1
        %s295 = smul.addr %s294, 8
        %s296 = scalar_lea.vmem [#allocation9], %s295
        %v297 = vld [vmem:[%s260] sm:$0xff]
        %v298 = vld [vmem:[#allocation6] sm:$0xff]
        %v299 = vld [vmem:[#allocation6 + $0x8] sm:$0xff]
        %v300 = vld [vmem:[#allocation6 + $0x10] sm:$0xff]
        %v301 = vld [vmem:[#allocation6 + $0x18] sm:$0xff]
        %v302 = vld [vmem:[#allocation6 + $0x20] sm:$0xff]
        %v303 = vld [vmem:[#allocation6 + $0x28] sm:$0xff]
        %v304 = vld [vmem:[#allocation6 + $0x30] sm:$0xff]
        %v305 = vld [vmem:[#allocation6 + $0x38] sm:$0xff]
        %v306 = vld [vmem:[#allocation6 + $0x40] sm:$0xff]
        %v307 = vld [vmem:[#allocation6 + $0x48] sm:$0xff]
        %v308 = vld [vmem:[#allocation6 + $0x50] sm:$0xff]
        %v309 = vld [vmem:[#allocation6 + $0x58] sm:$0xff]
        %v310 = vld [vmem:[#allocation6 + $0x60] sm:$0xff]
        %v311 = vld [vmem:[#allocation6 + $0x68] sm:$0xff]
        %v312 = vld [vmem:[#allocation6 + $0x70] sm:$0xff]
        %v313 = vld [vmem:[#allocation6 + $0x78] sm:$0xff]
        %v314 = vld [vmem:[%s2] sm:$0x1]
        %v316 = vlaneseq
        %v317 = vshrl.u32 %v316, 7
        %v318 = vsub.s32 0, %v317
        %v319 = vrot.slane %v314, %v318
        %321 = vmatprep.subr.mxu0 0.0
        %322 = vmatpush1.msra.mxu0 %v298
        %323 = vmatprep.subr.mxu0 0.0
        %324 = vmatpush1.msra.mxu0 %v299
        %325 = vmatprep.subr.mxu0 0.0
        %326 = vmatpush1.msra.mxu0 %v300
        %327 = vmatprep.subr.mxu0 0.0
        %328 = vmatpush1.msra.mxu0 %v301
        %329 = vmatprep.subr.mxu0 0.0
        %330 = vmatpush1.msra.mxu0 %v302
        %331 = vmatprep.subr.mxu0 0.0
        %332 = vmatpush1.msra.mxu0 %v303
        %333 = vmatprep.subr.mxu0 0.0
        %334 = vmatpush1.msra.mxu0 %v304
        %335 = vmatprep.subr.mxu0 0.0
        %336 = vmatpush1.msra.mxu0 %v305
        %337 = vmatprep.subr.mxu0 0.0
        %338 = vmatpush1.msra.mxu0 %v306
        %339 = vmatprep.subr.mxu0 0.0
        %340 = vmatpush1.msra.mxu0 %v307
        %341 = vmatprep.subr.mxu0 0.0
        %342 = vmatpush1.msra.mxu0 %v308
        %343 = vmatprep.subr.mxu0 0.0
        %344 = vmatpush1.msra.mxu0 %v309
        %345 = vmatprep.subr.mxu0 0.0
        %346 = vmatpush1.msra.mxu0 %v310
        %347 = vmatprep.subr.mxu0 0.0
        %348 = vmatpush1.msra.mxu0 %v311
        %349 = vmatprep.subr.mxu0 0.0
        %350 = vmatpush1.msra.mxu0 %v312
        %351 = vmatprep.subr.mxu0 0.0
        %352 = vmatpush1.msra.mxu0 %v313
        %353 = vmatprep.subr.mxu0 0.0
        %354 = vmatpush1.msra.mxu0 0.0
        %355 = vmatprep.subr.mxu0 0.0
        %356 = vmatpush1.msra.mxu0 0.0
        %357 = vmatprep.subr.mxu0 0.0
        %358 = vmatpush1.msra.mxu0 0.0
        %359 = vmatprep.subr.mxu0 0.0
        %360 = vmatpush1.msra.mxu0 0.0
        %361 = vmatprep.subr.mxu0 0.0
        %362 = vmatpush1.msra.mxu0 0.0
        %363 = vmatprep.subr.mxu0 0.0
        %364 = vmatpush1.msra.mxu0 0.0
        %365 = vmatprep.subr.mxu0 0.0
        %366 = vmatpush1.msra.mxu0 0.0
        %367 = vmatprep.subr.mxu0 0.0
        %368 = vmatpush1.msra.mxu0 0.0
        %369 = vmatprep.subr.mxu0 0.0
        %370 = vmatpush1.msra.mxu0 0.0
        %371 = vmatprep.subr.mxu0 0.0
        %372 = vmatpush1.msra.mxu0 0.0
        %373 = vmatprep.subr.mxu0 0.0
        %374 = vmatpush1.msra.mxu0 0.0
        %375 = vmatprep.subr.mxu0 0.0
        %376 = vmatpush1.msra.mxu0 0.0
        %377 = vmatprep.subr.mxu0 0.0
        %378 = vmatpush1.msra.mxu0 0.0
        %379 = vmatprep.subr.mxu0 0.0
        %380 = vmatpush1.msra.mxu0 0.0
        %381 = vmatprep.subr.mxu0 0.0
        %382 = vmatpush1.msra.mxu0 0.0
        %383 = vmatprep.subr.mxu0 0.0
        %384 = vmatpush1.msra.mxu0 0.0
        %385 = vmatprep.mubr.f32.mxu0 0.0
        %386 = vmatmul.mubr.f32.gmra.mrb[0].mxu0 %v297
        %v387 = vpop.f32.mrb[0].mxu0
        %v388 = vadd.f32 %v319, %v387
        %v389 = vpop.f32.mrb[0].mxu0
        %390 = vdwg.mxu0
        %v391 = vmax.f32 %v388, 0.0
        %v392 = vld [vmem:[#allocation8] sm:$0xff]
        %v393 = vld [vmem:[#allocation8 + $0x8] sm:$0xff]
        %v394 = vld [vmem:[#allocation8 + $0x10] sm:$0xff]
        %v395 = vld [vmem:[#allocation8 + $0x18] sm:$0xff]
        %v396 = vld [vmem:[#allocation8 + $0x20] sm:$0xff]
        %v397 = vld [vmem:[#allocation8 + $0x28] sm:$0xff]
        %v398 = vld [vmem:[#allocation8 + $0x30] sm:$0xff]
        %v399 = vld [vmem:[#allocation8 + $0x38] sm:$0xff]
        %v400 = vld [vmem:[#allocation8 + $0x40] sm:$0xff]
        %v401 = vld [vmem:[#allocation8 + $0x48] sm:$0xff]
        %v402 = vld [vmem:[#allocation8 + $0x50] sm:$0xff]
        %v403 = vld [vmem:[#allocation8 + $0x58] sm:$0xff]
        %v404 = vld [vmem:[#allocation8 + $0x60] sm:$0xff]
        %v405 = vld [vmem:[#allocation8 + $0x68] sm:$0xff]
        %v406 = vld [vmem:[#allocation8 + $0x70] sm:$0xff]
        %v407 = vld [vmem:[#allocation8 + $0x78] sm:$0xff]
        %408 = vmatprep.subr.mxu0 0.0
        %409 = vmatpush1.msra.mxu0 %v392
        %410 = vmatprep.subr.mxu0 0.0
        %411 = vmatpush1.msra.mxu0 %v393
        %412 = vmatprep.subr.mxu0 0.0
        %413 = vmatpush1.msra.mxu0 %v394
        %414 = vmatprep.subr.mxu0 0.0
        %415 = vmatpush1.msra.mxu0 %v395
        %416 = vmatprep.subr.mxu0 0.0
        %417 = vmatpush1.msra.mxu0 %v396
        %418 = vmatprep.subr.mxu0 0.0
        %419 = vmatpush1.msra.mxu0 %v397
        %420 = vmatprep.subr.mxu0 0.0
        %421 = vmatpush1.msra.mxu0 %v398
        %422 = vmatprep.subr.mxu0 0.0
        %423 = vmatpush1.msra.mxu0 %v399
        %424 = vmatprep.subr.mxu0 0.0
        %425 = vmatpush1.msra.mxu0 %v400
        %426 = vmatprep.subr.mxu0 0.0
        %427 = vmatpush1.msra.mxu0 %v401
        %428 = vmatprep.subr.mxu0 0.0
        %429 = vmatpush1.msra.mxu0 %v402
        %430 = vmatprep.subr.mxu0 0.0
        %431 = vmatpush1.msra.mxu0 %v403
        %432 = vmatprep.subr.mxu0 0.0
        %433 = vmatpush1.msra.mxu0 %v404
        %434 = vmatprep.subr.mxu0 0.0
        %435 = vmatpush1.msra.mxu0 %v405
        %436 = vmatprep.subr.mxu0 0.0
        %437 = vmatpush1.msra.mxu0 %v406
        %438 = vmatprep.subr.mxu0 0.0
        %439 = vmatpush1.msra.mxu0 %v407
        %440 = vmatprep.subr.mxu0 0.0
        %441 = vmatpush1.msra.mxu0 0.0
        %442 = vmatprep.subr.mxu0 0.0
        %443 = vmatpush1.msra.mxu0 0.0
        %444 = vmatprep.subr.mxu0 0.0
        %445 = vmatpush1.msra.mxu0 0.0
        %446 = vmatprep.subr.mxu0 0.0
        %447 = vmatpush1.msra.mxu0 0.0
        %448 = vmatprep.subr.mxu0 0.0
        %449 = vmatpush1.msra.mxu0 0.0
        %450 = vmatprep.subr.mxu0 0.0
        %451 = vmatpush1.msra.mxu0 0.0
        %452 = vmatprep.subr.mxu0 0.0
        %453 = vmatpush1.msra.mxu0 0.0
        %454 = vmatprep.subr.mxu0 0.0
        %455 = vmatpush1.msra.mxu0 0.0
        %456 = vmatprep.subr.mxu0 0.0
        %457 = vmatpush1.msra.mxu0 0.0
        %458 = vmatprep.subr.mxu0 0.0
        %459 = vmatpush1.msra.mxu0 0.0
        %460 = vmatprep.subr.mxu0 0.0
        %461 = vmatpush1.msra.mxu0 0.0
        %462 = vmatprep.subr.mxu0 0.0
        %463 = vmatpush1.msra.mxu0 0.0
        %464 = vmatprep.subr.mxu0 0.0
        %465 = vmatpush1.msra.mxu0 0.0
        %466 = vmatprep.subr.mxu0 0.0
        %467 = vmatpush1.msra.mxu0 0.0
        %468 = vmatprep.subr.mxu0 0.0
        %469 = vmatpush1.msra.mxu0 0.0
        %470 = vmatprep.subr.mxu0 0.0
        %471 = vmatpush1.msra.mxu0 0.0
        %472 = vmatprep.mubr.f32.mxu0 0.0
        %473 = vmatmul.mubr.f32.gmra.mrb[0].mxu0 %v391
        %v474 = vpop.f32.mrb[0].mxu0
        %v475 = vadd.f32 0.0, %v474
        %v476 = vpop.f32.mrb[0].mxu0
        %477 = vdwg.mxu0
        %s478 = sld [smem:[#allocation2]]
        %v479 = vstv %s478
        %v480 = vmul.f32 %v475, %v479
        %v481 = vld [vmem:[%s4] sm:$0x1]
        %v483 = vlaneseq
        %v484 = vshrl.u32 %v483, 7
        %v485 = vsub.s32 0, %v484
        %v486 = vrot.slane %v481, %v485
        %v488 = vadd.f32 %v480, %v486
        %489 = vst [vmem:[%s296] sm:$0xff] %v488
        %s490 = sand.u32 %s164, 1
        %s491 = scalar_lea.sflag [#allocation5], %s490
        %s492 = sand.u32 %s164, 1
        %s493 = smul.addr %s492, 8
        %s494 = scalar_lea.vmem [#allocation9], %s493
        // Predicated region
        $region57: #{tpu_custom_call.1} parent=43 // pred_check
          %p495 = pneg %p174
        $region58: #{tpu_custom_call.1} parent=43 // pred_check_branch
          %497 = sbr.rel (%p495) target = $region60
        $region59: #{tpu_custom_call.1} parent=43 // pred_region
          %s499 = ssub.s32 128, 128
          %500 = vsyncadd %s491, %s499
          %s501 = smul.addr %s25, 128
          %s502 = scalar_lea.hbm %s6, %s501
          %s504 = sshll.u32 %s494, 4
          %s505 = int_to_ptr.vmem [resolvable:$true] %s504
          %507 = dma.vmem_to_hbm [thread:$0]  %s505, 128, %s502, %s491
        $region60: #{tpu_custom_call.1} parent=43 // pred_fallthru
          _
      $region44: #{tpu_custom_call.1} parent=5 // pred_fallthru
        _
      %p508 = scmp.le.s32.totalorder 2, %s20
      // Predicated region
      $region61: #{tpu_custom_call.1} parent=5 // pred_check
        %p509 = pneg %p508
      $region62: #{tpu_custom_call.1} parent=5 // pred_check_branch
        %511 = sbr.rel (%p509) target = $region64
      $region63: #{tpu_custom_call.1} parent=5 // pred_region
        %s512 = ssub.s32 %s20, 2
        // Predicated region
        $region65: #{tpu_custom_call.1} parent=63 // pred_check
          %p513 = pneg %p180
        $region66: #{tpu_custom_call.1} parent=63 // pred_check_branch
          %515 = sbr.rel (%p513) target = $region68
        $region67: #{tpu_custom_call.1} parent=63 // pred_region
          %s516 = sand.u32 %s165, 1
          %s517 = scalar_lea.sflag [#allocation5], %s516
          %s518 = sand.u32 %s165, 1
          %s519 = smul.addr %s518, 8
          %s520 = scalar_lea.vmem [#allocation9], %s519
          %521 = dma.done %s517, 128
        $region68: #{tpu_custom_call.1} parent=63 // pred_fallthru
          _
      $region64: #{tpu_custom_call.1} parent=5 // pred_fallthru
        _
    $region6: #{tpu_custom_call.1} parent=1 // loop_footer
      %s24 = sadd.s32 1, %s20
    $region7: #{tpu_custom_call.1} parent=1 // loop_footer_branch
      %19 = sbr.rel target = $region3
    $region8: #{tpu_custom_call.1} parent=1 // loop_exit
      _
    %522 = vsyncpa [#allocation4], 1
    %s523 = scalar_lea.sflag [#allocation4], 1
    %524 = vsyncpa %s523, 1
    %525 = vsyncpa [#allocation7], 1
    %526 = vsyncpa [#allocation5], 1
    %s527 = scalar_lea.sflag [#allocation5], 1
    %528 = vsyncpa %s527, 1

// kernel: tpu_custom_call.1
$region0: #{tpu_custom_call.1}
  #allocation0 [shape = 'u32[]', space=smem, size = 0x4, offset = 0x4, fixed_abs, tag = 'smem constant byte address 0x4 - core index']
  #allocation1 [shape = 'u32[144,128]{1,0:T(1,128)}', space=vmem, size = 0x12000, scoped, tag = 'internal scratch']
  #allocation2 [shape = 'f32[1,1]{1,0:T(1,128)S(6)}', space=smem, size = 0x200, scoped, tag = 'scoped memory for tpu_custom_call.1']
  %s0 = inlined_call_operand.hbm [shape: f32[16,128], index: 0, kind: input, shape index: {}]
  %s1 = inlined_call_operand.hbm [shape: f32[128,128], index: 1, kind: input, shape index: {}]
  %s2 = inlined_call_operand.vmem [shape: f32[1,128], index: 2, kind: input, shape index: {}]
  %s3 = inlined_call_operand.hbm [shape: f32[128,128], index: 3, kind: input, shape index: {}]
  %s4 = inlined_call_operand.vmem [shape: f32[1,128], index: 4, kind: input, shape index: {}]
  %s5 = inlined_call_operand.<no memory space> [shape: f32[1,1], index: 5, kind: input, shape index: {}]
  %s6 = inlined_call_operand.hbm [shape: f32[16,128], index: 6, kind: output, shape index: {}]
  %s7 = sld [smem:[#allocation0]]
  $region69: #{tpu_custom_call.1} parent=0
    _
  %s9 = ssub.s32 1, %s7
  %s10 = scalar_select 0, %s9, %s7
  %11 = sst [smem:[#allocation2]] %s5
  $region1: #{tpu_custom_call.1} parent=0
    #allocation3 [shape = 'u8[8192]{0}', space=vmem, size = 0x2000, scoped, tag = 'input window, operand 0']
    #allocation4 [shape = 's32[2]{0}', space=sflag, size = 0x8, scoped, tag = 'scoped memory for tpu_custom_call.1']
    #allocation5 [shape = 's32[2]{0}', space=sflag, size = 0x8, scoped, tag = 'scoped memory for tpu_custom_call.1']
    #allocation6 [shape = 'u8[65536]{0}', space=vmem, size = 0x10000, scoped, tag = 'input window, operand 1, single buffered']
    #allocation7 [shape = 's32[1]{0}', space=sflag, size = 0x4, scoped, tag = 'scoped memory for tpu_custom_call.1']
    #allocation8 [shape = 'u8[65536]{0}', space=vmem, size = 0x10000, scoped, tag = 'input window, operand 3, single buffered']
    #allocation9 [shape = 'u8[8192]{0}', space=vmem, size = 0x2000, scoped, tag = 'output window, operand 0']
    %12 = vsyncpa [#allocation4], 0
    %s13 = scalar_lea.sflag [#allocation4], 1
    %14 = vsyncpa %s13, 0
    %15 = vsyncpa [#allocation7], 0
    %16 = vsyncpa [#allocation5], 0
    %s17 = scalar_lea.sflag [#allocation5], 1
    %18 = vsyncpa %s17, 0
    loop: start=0, step=1, limit=4
    $region2: #{tpu_custom_call.1} parent=1 // loop_pre_header
      _
    $region3: #{tpu_custom_call.1} parent=1 // loop_header
      %s20 = sphi 0, %s24
      %p21 = scmp.ge.s32.totalorder %s20, 4
      %s30 = sphi 0, %s32
      %s33 = sphi 0, %s30
      %s34 = sphi 0, %s33
      %s50 = sphi 0, %s34
      %s54 = sphi 0, %s54
      %s56 = sphi 0, %s54
      %s57 = sphi 0, %s56
      %s71 = sphi 0, %s57
      %s75 = sphi 0, %s75
      %s77 = sphi 0, %s75
      %s78 = sphi 0, %s77
      %s92 = sphi 0, %s78
      %s96 = sphi 0, %s96
      %s98 = sphi 0, %s96
      %s99 = sphi 0, %s98
      %s113 = sphi 0, %s99
      %s117 = sphi 0, %s117
      %s119 = sphi 0, %s117
      %s120 = sphi 0, %s119
      %s134 = sphi 0, %s120
      %s138 = sphi 0, %s138
      %s140 = sphi 0, %s138
      %s141 = sphi 0, %s140
      %s155 = sphi 0, %s141
      %s161 = sphi 0, %s163
      %s164 = sphi 0, %s161
      %s165 = sphi 0, %s164
      %s181 = sphi 0, %s165
    $region4: #{tpu_custom_call.1} parent=1 // loop_header_branch
      %23 = sbr.rel (%p21) target = $region8
    $region5: #{tpu_custom_call.1} parent=1 // loop_body
      %s25 = ssub.s32 %s20, 1
      %s26 = ssub.s32 %s20, 2
      %s27 = sadd.s32 %s20, 1
      %s28 = ssub.s32 %s20, %s27
      %p29 = scmp.eq.s32.totalorder %s28, 0
      %s31 = sadd.s32 %s30, 1
      %s32 = scalar_select %p29, %s30, %s31
      %p35 = pneg %p29
      %p36 = scmp.eq.s32.totalorder %s20, 1
      %p37 = por %p35, %p36
      %p38 = scmp.ne.s32.totalorder %s30, %s33
      %p39 = scmp.eq.s32.totalorder %s20, 0
      %p40 = por %p38, %p39
      %p41 = scmp.ne.s32.totalorder %s30, %s33
      %p42 = scmp.eq.s32.totalorder %s25, 1
      %p43 = por %p41, %p42
      %p44 = scmp.ne.s32.totalorder %s33, %s34
      %p45 = scmp.eq.s32.totalorder %s25, 0
      %p46 = por %p44, %p45
      %p47 = scmp.ne.s32.totalorder %s33, %s34
      %p48 = scmp.eq.s32.totalorder %s26, 1
      %p49 = por %p47, %p48
      %p51 = scmp.ne.s32.totalorder %s34, %s50
      %p52 = scmp.eq.s32.totalorder %s26, 0
      %p53 = por %p51, %p52
      %s55 = sadd.s32 %s54, 1
      %p58 = scmp.eq.s32.totalorder %s20, 1
      %p59 = scmp.ne.s32.totalorder %s54, %s56
      %p60 = scmp.eq.s32.totalorder %s20, 0
      %p61 = por %p59, %p60
      %p62 = scmp.ne.s32.totalorder %s54, %s56
      %p63 = scmp.eq.s32.totalorder %s25, 1
      %p64 = por %p62, %p63
      %p65 = scmp.ne.s32.totalorder %s56, %s57
      %p66 = scmp.eq.s32.totalorder %s25, 0
      %p67 = por %p65, %p66
      %p68 = scmp.ne.s32.totalorder %s56, %s57
      %p69 = scmp.eq.s32.totalorder %s26, 1
      %p70 = por %p68, %p69
      %p72 = scmp.ne.s32.totalorder %s57, %s71
      %p73 = scmp.eq.s32.totalorder %s26, 0
      %p74 = por %p72, %p73
      %s76 = sadd.s32 %s75, 1
      %p79 = scmp.eq.s32.totalorder %s20, 1
      %p80 = scmp.ne.s32.totalorder %s75, %s77
      %p81 = scmp.eq.s32.totalorder %s20, 0
      %p82 = por %p80, %p81
      %p83 = scmp.ne.s32.totalorder %s75, %s77
      %p84 = scmp.eq.s32.totalorder %s25, 1
      %p85 = por %p83, %p84
      %p86 = scmp.ne.s32.totalorder %s77, %s78
      %p87 = scmp.eq.s32.totalorder %s25, 0
      %p88 = por %p86, %p87
      %p89 = scmp.ne.s32.totalorder %s77, %s78
      %p90 = scmp.eq.s32.totalorder %s26, 1
      %p91 = por %p89, %p90
      %p93 = scmp.ne.s32.totalorder %s78, %s92
      %p94 = scmp.eq.s32.totalorder %s26, 0
      %p95 = por %p93, %p94
      %s97 = sadd.s32 %s96, 1
      %p100 = scmp.eq.s32.totalorder %s20, 1
      %p101 = scmp.ne.s32.totalorder %s96, %s98
      %p102 = scmp.eq.s32.totalorder %s20, 0
      %p103 = por %p101, %p102
      %p104 = scmp.ne.s32.totalorder %s96, %s98
      %p105 = scmp.eq.s32.totalorder %s25, 1
      %p106 = por %p104, %p105
      %p107 = scmp.ne.s32.totalorder %s98, %s99
      %p108 = scmp.eq.s32.totalorder %s25, 0
      %p109 = por %p107, %p108
      %p110 = scmp.ne.s32.totalorder %s98, %s99
      %p111 = scmp.eq.s32.totalorder %s26, 1
      %p112 = por %p110, %p111
      %p114 = scmp.ne.s32.totalorder %s99, %s113
      %p115 = scmp.eq.s32.totalorder %s26, 0
      %p116 = por %p114, %p115
      %s118 = sadd.s32 %s117, 1
      %p121 = scmp.eq.s32.totalorder %s20, 1
      %p122 = scmp.ne.s32.totalorder %s117, %s119
      %p123 = scmp.eq.s32.totalorder %s20, 0
      %p124 = por %p122, %p123
      %p125 = scmp.ne.s32.totalorder %s117, %s119
      %p126 = scmp.eq.s32.totalorder %s25, 1
      %p127 = por %p125, %p126
      %p128 = scmp.ne.s32.totalorder %s119, %s120
      %p129 = scmp.eq.s32.totalorder %s25, 0
      %p130 = por %p128, %p129
      %p131 = scmp.ne.s32.totalorder %s119, %s120
      %p132 = scmp.eq.s32.totalorder %s26, 1
      %p133 = por %p131, %p132
      %p135 = scmp.ne.s32.totalorder %s120, %s134
      %p136 = scmp.eq.s32.totalorder %s26, 0
      %p137 = por %p135, %p136
      %s139 = sadd.s32 %s138, 1
      %p142 = scmp.eq.s32.totalorder %s20, 1
      %p143 = scmp.ne.s32.totalorder %s138, %s140
      %p144 = scmp.eq.s32.totalorder %s20, 0
      %p145 = por %p143, %p144
      %p146 = scmp.ne.s32.totalorder %s138, %s140
      %p147 = scmp.eq.s32.totalorder %s25, 1
      %p148 = por %p146, %p147
      %p149 = scmp.ne.s32.totalorder %s140, %s141
      %p150 = scmp.eq.s32.totalorder %s25, 0
      %p151 = por %p149, %p150
      %p152 = scmp.ne.s32.totalorder %s140, %s141
      %p153 = scmp.eq.s32.totalorder %s26, 1
      %p154 = por %p152, %p153
      %p156 = scmp.ne.s32.totalorder %s141, %s155
      %p157 = scmp.eq.s32.totalorder %s26, 0
      %p158 = por %p156, %p157
      %s159 = ssub.s32 %s20, %s27
      %p160 = scmp.eq.s32.totalorder %s159, 0
      %s162 = sadd.s32 %s161, 1
      %s163 = scalar_select %p160, %s161, %s162
      %p166 = pneg %p160
      %p167 = scmp.eq.s32.totalorder %s20, 1
      %p168 = por %p166, %p167
      %p169 = scmp.ne.s32.totalorder %s161, %s164
      %p170 = scmp.eq.s32.totalorder %s20, 0
      %p171 = por %p169, %p170
      %p172 = scmp.ne.s32.totalorder %s161, %s164
      %p173 = scmp.eq.s32.totalorder %s25, 1
      %p174 = por %p172, %p173
      %p175 = scmp.ne.s32.totalorder %s164, %s165
      %p176 = scmp.eq.s32.totalorder %s25, 0
      %p177 = por %p175, %p176
      %p178 = scmp.ne.s32.totalorder %s164, %s165
      %p179 = scmp.eq.s32.totalorder %s26, 1
      %p180 = por %p178, %p179
      %p182 = scmp.ne.s32.totalorder %s165, %s181
      %p183 = scmp.eq.s32.totalorder %s26, 0
      %p184 = por %p182, %p183
      %p185 = scmp.le.s32.totalorder 1, %s20
      %p186 = scmp.lt.s32.totalorder %s20, 3
      %p187 = pnand %p185, %p186
      %p188 = pneg %p187
      // Predicated region
      $region9: #{tpu_custom_call.1} parent=5 // pred_check
        _
      $region10: #{tpu_custom_call.1} parent=5 // pred_check_branch
        %190 = sbr.rel (%p187) target = $region12
      $region11: #{tpu_custom_call.1} parent=5 // pred_region
        %s191 = ssub.s32 %s20, 1
        // Predicated region
        $region13: #{tpu_custom_call.1} parent=11 // pred_check
          %p192 = pneg %p67
        $region14: #{tpu_custom_call.1} parent=11 // pred_check_branch
          %194 = sbr.rel (%p192) target = $region16
        $region15: #{tpu_custom_call.1} parent=11 // pred_region
          %s196 = ssub.s32 2048, 2048
          %197 = vsyncadd [#allocation7], %s196
          %s198 = sshll.u32 [#allocation6], 4
          %s199 = int_to_ptr.vmem [resolvable:$true] %s198
          %204 = dma.hbm_to_vmem [thread:$0]  %s1, 2048, %s199, [#allocation7], 128, 128, 8
        $region16: #{tpu_custom_call.1} parent=11 // pred_fallthru
          _
        // Predicated region
        $region17: #{tpu_custom_call.1} parent=11 // pred_check
          %p205 = pneg %p88
        $region18: #{tpu_custom_call.1} parent=11 // pred_check_branch
          %207 = sbr.rel (%p205) target = $region20
        $region19: #{tpu_custom_call.1} parent=11 // pred_region
          _
        $region20: #{tpu_custom_call.1} parent=11 // pred_fallthru
          _
        // Predicated region
        $region21: #{tpu_custom_call.1} parent=11 // pred_check
          %p208 = pneg %p109
        $region22: #{tpu_custom_call.1} parent=11 // pred_check_branch
          %210 = sbr.rel (%p208) target = $region24
        $region23: #{tpu_custom_call.1} parent=11 // pred_region
          %s212 = ssub.s32 2048, 2048
          %213 = vsyncadd [#allocation7], %s212
          %s214 = sshll.u32 [#allocation8], 4
          %s215 = int_to_ptr.vmem [resolvable:$true] %s214
          %220 = dma.hbm_to_vmem [thread:$0]  %s3, 2048, %s215, [#allocation7], 128, 128, 8
        $region24: #{tpu_custom_call.1} parent=11 // pred_fallthru
          _
        // Predicated region
        $region25: #{tpu_custom_call.1} parent=11 // pred_check
          %p221 = pneg %p130
        $region26: #{tpu_custom_call.1} parent=11 // pred_check_branch
          %223 = sbr.rel (%p221) target = $region28
        $region27: #{tpu_custom_call.1} parent=11 // pred_region
          _
        $region28: #{tpu_custom_call.1} parent=11 // pred_fallthru
          _
        // Predicated region
        $region29: #{tpu_custom_call.1} parent=11 // pred_check
          %p224 = pneg %p151
        $region30: #{tpu_custom_call.1} parent=11 // pred_check_branch
          %226 = sbr.rel (%p224) target = $region32
        $region31: #{tpu_custom_call.1} parent=11 // pred_region
          _
        $region32: #{tpu_custom_call.1} parent=11 // pred_fallthru
          _
      $region12: #{tpu_custom_call.1} parent=5 // pred_fallthru
        _
      %p227 = scmp.lt.s32.totalorder %s20, 2
      // Predicated region
      $region33: #{tpu_custom_call.1} parent=5 // pred_check
        %p228 = pneg %p227
      $region34: #{tpu_custom_call.1} parent=5 // pred_check_branch
        %230 = sbr.rel (%p228) target = $region36
      $region35: #{tpu_custom_call.1} parent=5 // pred_region
        // Predicated region
        $region37: #{tpu_custom_call.1} parent=35 // pred_check
          %p231 = pneg %p40
        $region38: #{tpu_custom_call.1} parent=35 // pred_check_branch
          %233 = sbr.rel (%p231) target = $region40
        $region39: #{tpu_custom_call.1} parent=35 // pred_region
          %s234 = sand.u32 %s30, 1
          %s235 = scalar_lea.sflag [#allocation4], %s234
          %s236 = sand.u32 %s30, 1
          %s237 = smul.addr %s236, 8
          %s238 = scalar_lea.vmem [#allocation3], %s237
          %s240 = ssub.s32 128, 128
          %241 = vsyncadd %s235, %s240
          %s242 = smul.addr %s20, 128
          %s243 = scalar_lea.hbm %s0, %s242
          %s245 = sshll.u32 %s238, 4
          %s246 = int_to_ptr.vmem [resolvable:$true] %s245
          %248 = dma.hbm_to_vmem [thread:$0]  %s243, 128, %s246, %s235
        $region40: #{tpu_custom_call.1} parent=35 // pred_fallthru
          _
      $region36: #{tpu_custom_call.1} parent=5 // pred_fallthru
        _
      %p249 = scmp.le.s32.totalorder 1, %s20
      %p250 = scmp.lt.s32.totalorder %s20, 3
      %p251 = pnand %p249, %p250
      %p252 = pneg %p251
      // Predicated region
      $region41: #{tpu_custom_call.1} parent=5 // pred_check
        _
      $region42: #{tpu_custom_call.1} parent=5 // pred_check_branch
        %254 = sbr.rel (%p251) target = $region44
      $region43: #{tpu_custom_call.1} parent=5 // pred_region
        %s255 = ssub.s32 %s20, 1
        %s256 = sand.u32 %s33, 1
        %s257 = scalar_lea.sflag [#allocation4], %s256
        %s258 = sand.u32 %s33, 1
        %s259 = smul.addr %s258, 8
        %s260 = scalar_lea.vmem [#allocation3], %s259
        // Predicated region
        $region45: #{tpu_custom_call.1} parent=43 // pred_check
          %p261 = pneg %p46
        $region46: #{tpu_custom_call.1} parent=43 // pred_check_branch
          %263 = sbr.rel (%p261) target = $region48
        $region47: #{tpu_custom_call.1} parent=43 // pred_region
          %264 = dma.done %s257, 128
        $region48: #{tpu_custom_call.1} parent=43 // pred_fallthru
          _
        // Predicated region
        $region49: #{tpu_custom_call.1} parent=43 // pred_check
          %p265 = pneg %p67
        $region50: #{tpu_custom_call.1} parent=43 // pred_check_branch
          %267 = sbr.rel (%p265) target = $region52
        $region51: #{tpu_custom_call.1} parent=43 // pred_region
          %268 = dma.done [#allocation7], 2048
        $region52: #{tpu_custom_call.1} parent=43 // pred_fallthru
          _
        // Predicated region
        $region53: #{tpu_custom_call.1} parent=43 // pred_check
          %p269 = pneg %p109
        $region54: #{tpu_custom_call.1} parent=43 // pred_check_branch
          %271 = sbr.rel (%p269) target = $region56
        $region55: #{tpu_custom_call.1} parent=43 // pred_region
          %272 = dma.done [#allocation7], 2048
        $region56: #{tpu_custom_call.1} parent=43 // pred_fallthru
          _
        %s273 = sand.u32 %s33, 1
        %s274 = scalar_lea.sflag [#allocation4], %s273
        %s275 = sand.u32 %s33, 1
        %s276 = smul.addr %s275, 8
        %s277 = scalar_lea.vmem [#allocation3], %s276
        %p278 = pneg %p46
        %p279 = pneg %p43
        %p280 = pneg %p67
        %p281 = pneg %p64
        %p282 = pneg %p88
        %p283 = pneg %p85
        %p284 = pneg %p109
        %p285 = pneg %p106
        %p286 = pneg %p130
        %p287 = pneg %p127
        %p288 = pneg %p151
        %p289 = pneg %p148
        %p290 = pneg %p177
        %p291 = pneg %p174
        %s292 = sand.u32 %s164, 1
        %s293 = scalar_lea.sflag [#allocation5], %s292
        %s294 = sand.u32 %s164, 1
        %s295 = smul.addr %s294, 8
        %s296 = scalar_lea.vmem [#allocation9], %s295
        %v297 = vld [vmem:[%s260] sm:$0xff]
        %v298 = vld [vmem:[#allocation6] sm:$0xff]
        %v299 = vld [vmem:[#allocation6 + $0x8] sm:$0xff]
        %v300 = vld [vmem:[#allocation6 + $0x10] sm:$0xff]
        %v301 = vld [vmem:[#allocation6 + $0x18] sm:$0xff]
        %v302 = vld [vmem:[#allocation6 + $0x20] sm:$0xff]
        %v303 = vld [vmem:[#allocation6 + $0x28] sm:$0xff]
        %v304 = vld [vmem:[#allocation6 + $0x30] sm:$0xff]
        %v305 = vld [vmem:[#allocation6 + $0x38] sm:$0xff]
        %v306 = vld [vmem:[#allocation6 + $0x40] sm:$0xff]
        %v307 = vld [vmem:[#allocation6 + $0x48] sm:$0xff]
        %v308 = vld [vmem:[#allocation6 + $0x50] sm:$0xff]
        %v309 = vld [vmem:[#allocation6 + $0x58] sm:$0xff]
        %v310 = vld [vmem:[#allocation6 + $0x60] sm:$0xff]
        %v311 = vld [vmem:[#allocation6 + $0x68] sm:$0xff]
        %v312 = vld [vmem:[#allocation6 + $0x70] sm:$0xff]
        %v313 = vld [vmem:[#allocation6 + $0x78] sm:$0xff]
        %v314 = vld [vmem:[%s2] sm:$0x1]
        %v316 = vlaneseq
        %v317 = vshrl.u32 %v316, 7
        %v318 = vsub.s32 0, %v317
        %v319 = vrot.slane %v314, %v318
        %321 = vmatprep.subr.mxu0 0.0
        %322 = vmatpush1.msra.mxu0 %v298
        %323 = vmatprep.subr.mxu0 0.0
        %324 = vmatpush1.msra.mxu0 %v299
        %325 = vmatprep.subr.mxu0 0.0
        %326 = vmatpush1.msra.mxu0 %v300
        %327 = vmatprep.subr.mxu0 0.0
        %328 = vmatpush1.msra.mxu0 %v301
        %329 = vmatprep.subr.mxu0 0.0
        %330 = vmatpush1.msra.mxu0 %v302
        %331 = vmatprep.subr.mxu0 0.0
        %332 = vmatpush1.msra.mxu0 %v303
        %333 = vmatprep.subr.mxu0 0.0
        %334 = vmatpush1.msra.mxu0 %v304
        %335 = vmatprep.subr.mxu0 0.0
        %336 = vmatpush1.msra.mxu0 %v305
        %337 = vmatprep.subr.mxu0 0.0
        %338 = vmatpush1.msra.mxu0 %v306
        %339 = vmatprep.subr.mxu0 0.0
        %340 = vmatpush1.msra.mxu0 %v307
        %341 = vmatprep.subr.mxu0 0.0
        %342 = vmatpush1.msra.mxu0 %v308
        %343 = vmatprep.subr.mxu0 0.0
        %344 = vmatpush1.msra.mxu0 %v309
        %345 = vmatprep.subr.mxu0 0.0
        %346 = vmatpush1.msra.mxu0 %v310
        %347 = vmatprep.subr.mxu0 0.0
        %348 = vmatpush1.msra.mxu0 %v311
        %349 = vmatprep.subr.mxu0 0.0
        %350 = vmatpush1.msra.mxu0 %v312
        %351 = vmatprep.subr.mxu0 0.0
        %352 = vmatpush1.msra.mxu0 %v313
        %353 = vmatprep.subr.mxu0 0.0
        %354 = vmatpush1.msra.mxu0 0.0
        %355 = vmatprep.subr.mxu0 0.0
        %356 = vmatpush1.msra.mxu0 0.0
        %357 = vmatprep.subr.mxu0 0.0
        %358 = vmatpush1.msra.mxu0 0.0
        %359 = vmatprep.subr.mxu0 0.0
        %360 = vmatpush1.msra.mxu0 0.0
        %361 = vmatprep.subr.mxu0 0.0
        %362 = vmatpush1.msra.mxu0 0.0
        %363 = vmatprep.subr.mxu0 0.0
        %364 = vmatpush1.msra.mxu0 0.0
        %365 = vmatprep.subr.mxu0 0.0
        %366 = vmatpush1.msra.mxu0 0.0
        %367 = vmatprep.subr.mxu0 0.0
        %368 = vmatpush1.msra.mxu0 0.0
        %369 = vmatprep.subr.mxu0 0.0
        %370 = vmatpush1.msra.mxu0 0.0
        %371 = vmatprep.subr.mxu0 0.0
        %372 = vmatpush1.msra.mxu0 0.0
        %373 = vmatprep.subr.mxu0 0.0
        %374 = vmatpush1.msra.mxu0 0.0
        %375 = vmatprep.subr.mxu0 0.0
        %376 = vmatpush1.msra.mxu0 0.0
        %377 = vmatprep.subr.mxu0 0.0
        %378 = vmatpush1.msra.mxu0 0.0
        %379 = vmatprep.subr.mxu0 0.0
        %380 = vmatpush1.msra.mxu0 0.0
        %381 = vmatprep.subr.mxu0 0.0
        %382 = vmatpush1.msra.mxu0 0.0
        %383 = vmatprep.subr.mxu0 0.0
        %384 = vmatpush1.msra.mxu0 0.0
        %385 = vmatprep.mubr.f32.mxu0 0.0
        %386 = vmatmul.mubr.f32.gmra.mrb[0].mxu0 %v297
        %v387 = vpop.f32.mrb[0].mxu0
        %v388 = vadd.f32 %v319, %v387
        %v389 = vpop.f32.mrb[0].mxu0
        %390 = vdwg.mxu0
        %v391 = vmax.f32 %v388, 0.0
        %v392 = vld [vmem:[#allocation8] sm:$0xff]
        %v393 = vld [vmem:[#allocation8 + $0x8] sm:$0xff]
        %v394 = vld [vmem:[#allocation8 + $0x10] sm:$0xff]
        %v395 = vld [vmem:[#allocation8 + $0x18] sm:$0xff]
        %v396 = vld [vmem:[#allocation8 + $0x20] sm:$0xff]
        %v397 = vld [vmem:[#allocation8 + $0x28] sm:$0xff]
        %v398 = vld [vmem:[#allocation8 + $0x30] sm:$0xff]
        %v399 = vld [vmem:[#allocation8 + $0x38] sm:$0xff]
        %v400 = vld [vmem:[#allocation8 + $0x40] sm:$0xff]
        %v401 = vld [vmem:[#allocation8 + $0x48] sm:$0xff]
        %v402 = vld [vmem:[#allocation8 + $0x50] sm:$0xff]
        %v403 = vld [vmem:[#allocation8 + $0x58] sm:$0xff]
        %v404 = vld [vmem:[#allocation8 + $0x60] sm:$0xff]
        %v405 = vld [vmem:[#allocation8 + $0x68] sm:$0xff]
        %v406 = vld [vmem:[#allocation8 + $0x70] sm:$0xff]
        %v407 = vld [vmem:[#allocation8 + $0x78] sm:$0xff]
        %408 = vmatprep.subr.mxu0 0.0
        %409 = vmatpush1.msra.mxu0 %v392
        %410 = vmatprep.subr.mxu0 0.0
        %411 = vmatpush1.msra.mxu0 %v393
        %412 = vmatprep.subr.mxu0 0.0
        %413 = vmatpush1.msra.mxu0 %v394
        %414 = vmatprep.subr.mxu0 0.0
        %415 = vmatpush1.msra.mxu0 %v395
        %416 = vmatprep.subr.mxu0 0.0
        %417 = vmatpush1.msra.mxu0 %v396
        %418 = vmatprep.subr.mxu0 0.0
        %419 = vmatpush1.msra.mxu0 %v397
        %420 = vmatprep.subr.mxu0 0.0
        %421 = vmatpush1.msra.mxu0 %v398
        %422 = vmatprep.subr.mxu0 0.0
        %423 = vmatpush1.msra.mxu0 %v399
        %424 = vmatprep.subr.mxu0 0.0
        %425 = vmatpush1.msra.mxu0 %v400
        %426 = vmatprep.subr.mxu0 0.0
        %427 = vmatpush1.msra.mxu0 %v401
        %428 = vmatprep.subr.mxu0 0.0
        %429 = vmatpush1.msra.mxu0 %v402
        %430 = vmatprep.subr.mxu0 0.0
        %431 = vmatpush1.msra.mxu0 %v403
        %432 = vmatprep.subr.mxu0 0.0
        %433 = vmatpush1.msra.mxu0 %v404
        %434 = vmatprep.subr.mxu0 0.0
        %435 = vmatpush1.msra.mxu0 %v405
        %436 = vmatprep.subr.mxu0 0.0
        %437 = vmatpush1.msra.mxu0 %v406
        %438 = vmatprep.subr.mxu0 0.0
        %439 = vmatpush1.msra.mxu0 %v407
        %440 = vmatprep.subr.mxu0 0.0
        %441 = vmatpush1.msra.mxu0 0.0
        %442 = vmatprep.subr.mxu0 0.0
        %443 = vmatpush1.msra.mxu0 0.0
        %444 = vmatprep.subr.mxu0 0.0
        %445 = vmatpush1.msra.mxu0 0.0
        %446 = vmatprep.subr.mxu0 0.0
        %447 = vmatpush1.msra.mxu0 0.0
        %448 = vmatprep.subr.mxu0 0.0
        %449 = vmatpush1.msra.mxu0 0.0
        %450 = vmatprep.subr.mxu0 0.0
        %451 = vmatpush1.msra.mxu0 0.0
        %452 = vmatprep.subr.mxu0 0.0
        %453 = vmatpush1.msra.mxu0 0.0
        %454 = vmatprep.subr.mxu0 0.0
        %455 = vmatpush1.msra.mxu0 0.0
        %456 = vmatprep.subr.mxu0 0.0
        %457 = vmatpush1.msra.mxu0 0.0
        %458 = vmatprep.subr.mxu0 0.0
        %459 = vmatpush1.msra.mxu0 0.0
        %460 = vmatprep.subr.mxu0 0.0
        %461 = vmatpush1.msra.mxu0 0.0
        %462 = vmatprep.subr.mxu0 0.0
        %463 = vmatpush1.msra.mxu0 0.0
        %464 = vmatprep.subr.mxu0 0.0
        %465 = vmatpush1.msra.mxu0 0.0
        %466 = vmatprep.subr.mxu0 0.0
        %467 = vmatpush1.msra.mxu0 0.0
        %468 = vmatprep.subr.mxu0 0.0
        %469 = vmatpush1.msra.mxu0 0.0
        %470 = vmatprep.subr.mxu0 0.0
        %471 = vmatpush1.msra.mxu0 0.0
        %472 = vmatprep.mubr.f32.mxu0 0.0
        %473 = vmatmul.mubr.f32.gmra.mrb[0].mxu0 %v391
        %v474 = vpop.f32.mrb[0].mxu0
        %v475 = vadd.f32 0.0, %v474
        %v476 = vpop.f32.mrb[0].mxu0
        %477 = vdwg.mxu0
        %s478 = sld [smem:[#allocation2]]
        %v479 = vstv %s478
        %v480 = vmul.f32 %v475, %v479
        %v481 = vld [vmem:[%s4] sm:$0x1]
        %v483 = vlaneseq
        %v484 = vshrl.u32 %v483, 7
        %v485 = vsub.s32 0, %v484
        %v486 = vrot.slane %v481, %v485
        %v488 = vadd.f32 %v480, %v486
        %489 = vst [vmem:[%s296] sm:$0xff] %v488
        %s490 = sand.u32 %s164, 1
        %s491 = scalar_lea.sflag [#allocation5], %s490
        %s492 = sand.u32 %s164, 1
        %s493 = smul.addr %s492, 8
        %s494 = scalar_lea.vmem [#allocation9], %s493
        // Predicated region
        $region57: #{tpu_custom_call.1} parent=43 // pred_check
          %p495 = pneg %p174
        $region58: #{tpu_custom_call.1} parent=43 // pred_check_branch
          %497 = sbr.rel (%p495) target = $region60
        $region59: #{tpu_custom_call.1} parent=43 // pred_region
          %s499 = ssub.s32 128, 128
          %500 = vsyncadd %s491, %s499
          %s501 = smul.addr %s25, 128
          %s502 = scalar_lea.hbm %s6, %s501
          %s504 = sshll.u32 %s494, 4
          %s505 = int_to_ptr.vmem [resolvable:$true] %s504
          %507 = dma.vmem_to_hbm [thread:$0]  %s505, 128, %s502, %s491
        $region60: #{tpu_custom_call.1} parent=43 // pred_fallthru
          _
      $region44: #{tpu_custom_call.1} parent=5 // pred_fallthru
        _
      %p508 = scmp.le.s32.totalorder 2, %s20
      // Predicated region
      $region61: #{tpu_custom_call.1} parent=5 // pred_check
        %p509 = pneg %p508
      $region62: #{tpu_custom_call.1} parent=5 // pred_check_branch
        %511 = sbr.rel (%p509) target = $region64
      $region63: #{tpu_custom_call.1} parent=5 // pred_region
        %s512 = ssub.s32 %s20, 2
        // Predicated region
        $region65: #{tpu_custom_call.1} parent=63 // pred_check
          %p513 = pneg %p180
        $region66: #{tpu_custom_call.1} parent=63 // pred_check_branch
          %515 = sbr.rel (%p513) target = $region68
        $region67: #{tpu_custom_call.1} parent=63 // pred_region
          %s516 = sand.u32 %s165, 1
          %s517 = scalar_lea.sflag [#allocation5], %s516
          %s518 = sand.u32 %s165, 1
          %s519 = smul.addr %s518, 8
          %s520 = scalar_lea.vmem [#allocation9], %s519
          %521 = dma.done %s517, 128
        $region68: #{tpu_custom_call.1} parent=63 // pred_fallthru
          _
      $region64: #{tpu_custom_call.1} parent=5 // pred_fallthru
        _
    $region6: #{tpu_custom_call.1} parent=1 // loop_footer
      %s24 = sadd.s32 1, %s20
    $region7: #{tpu_custom_call.1} parent=1 // loop_footer_branch
      %19 = sbr.rel target = $region3
    $region8: #{tpu_custom_call.1} parent=1 // loop_exit
      _
    %522 = vsyncpa [#allocation4], 1
    %s523 = scalar_lea.sflag [#allocation4], 1
    %524 = vsyncpa %s523, 1
    %525 = vsyncpa [#allocation7], 1
    %526 = vsyncpa [#allocation5], 1
    %s527 = scalar_lea.sflag [#allocation5], 1
    %528 = vsyncpa %s527, 1

</llo_original>
